<compile_context>
chip_gen: v7x
topology: tpu7x:2x2x1
jax: 0.10.0
libtpu: 0.0.40
codegen_flags: <defaults>
</compile_context>

<pallas_src>
import math

import jax
import jax.numpy as jnp
from jax.experimental import pallas as pl
from jax.experimental.pallas import tpu as pltpu

F0 = 0.25  # cfg.base_freq -- deterministic, set in-script (synthetic config)

_LOG2_RECIP = 1.0 / math.log(2.0)
_LANES = 128
_SMALL_N = 16384      # below this, launch/glue overhead dominates -> plain jnp
_SPLIT_ROWS = 2048    # above ~1 MiB/array force an even >= 4-step grid (v7x megacore)


def _elem_exp_loss_kernel(p_ref, t_ref, o_ref):
    # In-kernel upcast: free on the VPU, keeps HBM traffic at the native width.
    p = p_ref[...].astype(jnp.float32)
    t = t_ref[...].astype(jnp.float32)
    # log2(a/b) = (log(a) - log(b)) / log(2); the two logs go to the EUP slot.
    o_ref[...] = jnp.abs((jnp.log(p + F0) - jnp.log(t + F0)) * _LOG2_RECIP)


def _round_up(x: int, m: int) -> int:
    return ((x + m - 1) // m) * m


def _max_tile_rows() -> int:
    # Per-array, per-buffer block bytes (rows x 128 lanes x 4 B f32):
    #   v5e : 2048 rows -> 1 MiB  (6 MiB double-buffered; 16 MiB scoped default)
    #   v6e : 4096 rows -> 2 MiB  (12 MiB; 32 MiB default)
    #   v7x : 8192 rows -> 4 MiB  (24 MiB; 32 MiB default, amortizes per-step
    #         overhead against the ~3.2 TB/s per-TC HBM bandwidth)
    try:
        kind = jax.devices()[0].device_kind.lower()
    except Exception:
        return 2048
    if "v7" in kind:
        return 8192
    if "v6" in kind:
        return 4096
    return 2048  # v5e / v5p / unknown: conservative, still ~85% of roofline


def _pick_tiling(rows: int) -> tuple[int, int]:
    max_rows = _max_tile_rows()
    num_blocks = pl.cdiv(rows, max_rows)
    if rows > _SPLIT_ROWS:
        # v7x megacore: even number of steps >= 4 so each TensorCore gets a
        # balanced, pipelined share of the "parallel" grid axis.
        num_blocks = max(num_blocks, 4)
        num_blocks += num_blocks % 2
    # Multiple of 32 keeps bf16 / fp8 sublane tiling legal (f32 only needs 8).
    tile_rows = min(max_rows, _round_up(pl.cdiv(rows, num_blocks), 32))
    grid = pl.cdiv(rows, tile_rows)  # last block may be partial -> masked by Pallas
    return tile_rows, grid


@jax.jit
def elem_exp_loss(product: jax.Array, target: jax.Array) -> jax.Array:
    """Element-wise |log2((product + f0)/(target + f0))|, f32 output."""
    product = jnp.asarray(product)
    target = jnp.asarray(target)
    assert product.shape == target.shape

    # Keep native bf16/f16/f32; promote ints (and any f64) to f32.
    def _as_float(x):
        if (not jnp.issubdtype(x.dtype, jnp.floating)) or x.dtype == jnp.float64:
            return x.astype(jnp.float32)
        return x

    product = _as_float(product)
    target = _as_float(target)

    orig_shape = product.shape
    n = int(product.size)

    if n == 0:
        return jnp.zeros(orig_shape, jnp.float32)

    if n < _SMALL_N or (n % _LANES) != 0:
        # Scalar / small inputs: kernel launch would dominate.  Large inputs
        # whose size is not a multiple of 128 cannot be viewed as (rows, 128)
        # without a padding copy; XLA's fused elementwise kernel is already at
        # the HBM roofline for this op, so falling back is strictly faster
        # than pad + pallas + slice.
        p32 = product.astype(jnp.float32)
        t32 = target.astype(jnp.float32)
        return jnp.abs(jnp.log2((p32 + F0) / (t32 + F0)))

    rows = n // _LANES
    p2 = product.reshape(rows, _LANES)   # free reshape under jit
    t2 = target.reshape(rows, _LANES)
    tile_rows, grid = _pick_tiling(rows)

    out = pl.pallas_call(
        _elem_exp_loss_kernel,
        out_shape=jax.ShapeDtypeStruct((rows, _LANES), jnp.float32),
        grid=(grid,),
        in_specs=[
            pl.BlockSpec((tile_rows, _LANES), lambda i: (i, 0)),
            pl.BlockSpec((tile_rows, _LANES), lambda i: (i, 0)),
        ],
        out_specs=pl.BlockSpec((tile_rows, _LANES), lambda i: (i, 0)),
        compiler_params=pltpu.CompilerParams(
            dimension_semantics=("parallel",)
        ),
    )(p2, t2)

    return out.reshape(orig_shape)


if __name__ == "__main__":
    key = jax.random.PRNGKey(0)
    kp, kt = jax.random.split(key)

    def ref(p, t):
        p32 = jnp.asarray(p, jnp.float32)
        t32 = jnp.asarray(t, jnp.float32)
        return jnp.abs(jnp.log2((p32 + F0) / (t32 + F0)))

    # 1) Pallas path: 128-aligned, above the small-input threshold.
    shape = (2, 64, 128)  # 16384 elements
    p1 = jax.random.uniform(kp, shape, jnp.float32, minval=0.1, maxval=4.0)
    t1 = jax.random.uniform(kt, shape, jnp.float32, minval=0.1, maxval=4.0)
    o1 = jax.block_until_ready(elem_exp_loss(p1, t1))
    assert o1.shape == shape and o1.dtype == jnp.float32
    assert jnp.allclose(o1, ref(p1, t1), atol=1e-5, rtol=1e-5)

    # 2) Pallas path: bf16 inputs, multi-step grid with a masked boundary block.
    rows = 2100  # > _SPLIT_ROWS -> 4 steps; 4 * tile_rows > rows -> partial last block
    p2 = jax.random.uniform(kp, (rows, _LANES), jnp.float32, minval=0.1,
                            maxval=4.0).astype(jnp.bfloat16)
    t2 = jax.random.uniform(kt, (rows, _LANES), jnp.float32, minval=0.1,
                            maxval=4.0).astype(jnp.bfloat16)
    o2 = jax.block_until_ready(elem_exp_loss(p2, t2))
    assert jnp.allclose(o2, ref(p2, t2), atol=1e-5, rtol=1e-5)

    # 3) Small-shape fast path.
    p3 = jax.random.uniform(kp, (2, 4, 16), jnp.float32, minval=0.1, maxval=4.0)
    t3 = jax.random.uniform(kt, (2, 4, 16), jnp.float32, minval=0.1, maxval=4.0)
    o3 = jax.block_until_ready(elem_exp_loss(p3, t3))
    assert jnp.allclose(o3, ref(p3, t3), atol=1e-5, rtol=1e-5)

    # Scalar case -- mirrors the original forward(product: float, target: float).
    ps, ts = 1.7, 0.9
    os_ = jax.block_until_ready(elem_exp_loss(jnp.float32(ps), jnp.float32(ts)))
    assert abs(float(os_) - abs(math.log2((ps + F0) / (ts + F0)))) < 1e-5

    # 4) Large but not a multiple of 128 -> fused-jnp fallback branch.
    p4 = jax.random.uniform(kp, (33, 1000), jnp.float32, minval=0.1, maxval=4.0)
    t4 = jax.random.uniform(kt, (33, 1000), jnp.float32, minval=0.1, maxval=4.0)
    o4 = jax.block_until_ready(elem_exp_loss(p4, t4))
    assert jnp.allclose(o4, ref(p4, t4), atol=1e-5, rtol=1e-5)

    print("KERNEL_OK")
</pallas_src>

<mosaic_0001>
module attributes {stable_mosaic.version = 11 : i64} {
  func.func @_elem_exp_loss_kernel(%arg0: i32, %arg1: memref<128x128xf32, #tpu.memory_space<vmem>>, %arg2: memref<128x128xf32, #tpu.memory_space<vmem>>, %arg3: memref<128x128xf32, #tpu.memory_space<vmem>>) attributes {dimension_semantics = [#tpu.dimension_semantics<parallel>], iteration_bounds = array<i64: 1>, scalar_prefetch = 0 : i64, scratch_operands = 0 : i64, tpu.core_type = #tpu.core_type<tc>, window_params = [{transform_indices = @transform_0, window_bounds = array<i64: 128, 128>}, {transform_indices = @transform_1, window_bounds = array<i64: 128, 128>}, {transform_indices = @transform_2, window_bounds = array<i64: 128, 128>}]} {
    %c0 = arith.constant 0 : index
    %c0_0 = arith.constant 0 : index
    %0 = vector.load %arg1[%c0, %c0_0] : memref<128x128xf32, #tpu.memory_space<vmem>>, vector<128x128xf32>
    %c0_1 = arith.constant 0 : index
    %c0_2 = arith.constant 0 : index
    %1 = vector.load %arg2[%c0_1, %c0_2] : memref<128x128xf32, #tpu.memory_space<vmem>>, vector<128x128xf32>
    %cst = arith.constant 2.500000e-01 : f32
    %2 = vector.broadcast %cst : f32 to vector<128x128xf32>
    %3 = arith.addf %0, %2 : vector<128x128xf32>
    %4 = math.log %3 : vector<128x128xf32>
    %cst_3 = arith.constant 2.500000e-01 : f32
    %5 = vector.broadcast %cst_3 : f32 to vector<128x128xf32>
    %6 = arith.addf %1, %5 : vector<128x128xf32>
    %7 = math.log %6 : vector<128x128xf32>
    %8 = arith.subf %4, %7 : vector<128x128xf32>
    %cst_4 = arith.constant 1.44269502 : f32
    %9 = vector.broadcast %cst_4 : f32 to vector<128x128xf32>
    %10 = arith.mulf %8, %9 : vector<128x128xf32>
    %11 = math.absf %10 : vector<128x128xf32>
    %c0_5 = arith.constant 0 : index
    %c0_6 = arith.constant 0 : index
    %12 = vector.load %arg3[%c0_5, %c0_6] : memref<128x128xf32, #tpu.memory_space<vmem>>, vector<128x128xf32>
    tpu.vector_store %arg3[%c0_5, %c0_6], %11 {strides = array<i32>} : memref<128x128xf32, #tpu.memory_space<vmem>>, vector<128x128xf32>,
    return
  }
  func.func @transform_0(%arg0: i32) -> (i32, i32) {
    %c0_i32 = arith.constant 0 : i32
    %c0_i32_0 = arith.constant 0 : i32
    return %arg0, %c0_i32 : i32, i32
  }
  func.func @transform_1(%arg0: i32) -> (i32, i32) {
    %c0_i32 = arith.constant 0 : i32
    %c0_i32_0 = arith.constant 0 : i32
    return %arg0, %c0_i32 : i32, i32
  }
  func.func @transform_2(%arg0: i32) -> (i32, i32) {
    %c0_i32 = arith.constant 0 : i32
    %c0_i32_0 = arith.constant 0 : i32
    return %arg0, %c0_i32 : i32, i32
  }
}

</mosaic_0001>

<llo_original>
// kernel: elem_exp_loss.1
$region0: #{elem_exp_loss.1}
  #allocation0 [shape = 'u32[]', space=smem, size = 0x4, offset = 0x4, fixed_abs, tag = 'smem constant byte address 0x4 - core index']
  #allocation1 [shape = 'u32[144,128]{1,0:T(1,128)}', space=vmem, size = 0x12000, scoped, tag = 'internal scratch']
  %s0 = inlined_call_operand.hbm [shape: f32[128,128], index: 0, kind: input, shape index: {}]
  %s1 = inlined_call_operand.hbm [shape: f32[128,128], index: 1, kind: input, shape index: {}]
  %s2 = inlined_call_operand.hbm [shape: f32[128,128], index: 2, kind: output, shape index: {}]
  %s3 = sld [smem:[#allocation0]]
  $region26: #{elem_exp_loss.1} parent=0
    _
  %s5 = ssub.s32 1, %s3
  %s6 = scalar_select 0, %s5, %s3
  $region1: #{elem_exp_loss.1} parent=0
    #allocation2 [shape = 'u8[65536]{0}', space=vmem, size = 0x10000, scoped, tag = 'input window, operand 0, single buffered']
    #allocation3 [shape = 's32[1]{0}', space=sflag, size = 0x4, scoped, tag = 'scoped memory for elem_exp_loss.1']
    #allocation4 [shape = 's32[1]{0}', space=sflag, size = 0x4, scoped, tag = 'scoped memory for elem_exp_loss.1']
    #allocation5 [shape = 'u8[65536]{0}', space=vmem, size = 0x10000, scoped, tag = 'input window, operand 1, single buffered']
    #allocation6 [shape = 's32[1]{0}', space=sflag, size = 0x4, scoped, tag = 'scoped memory for elem_exp_loss.1']
    #allocation7 [shape = 'u8[65536]{0}', space=vmem, size = 0x10000, scoped, tag = 'output window, operand 0, single buffered']
    %7 = vsyncpa [#allocation3], 0
    %8 = vsyncpa [#allocation6], 0
    %9 = vsyncpa [#allocation4], 0
    // Predicated region
    $region2: #{elem_exp_loss.1} parent=1 // pred_check
      _
    $region3: #{elem_exp_loss.1} parent=1 // pred_check_branch
      %11 = sbr.rel (0) target = $region5
    $region4: #{elem_exp_loss.1} parent=1 // pred_region
      %s13 = ssub.s32 2048, 2048
      %14 = vsyncadd [#allocation3], %s13
      %s15 = sshll.u32 [#allocation2], 4
      %s16 = int_to_ptr.vmem [resolvable:$true] %s15
      %21 = dma.hbm_to_vmem [thread:$0]  %s0, 2048, %s16, [#allocation3], 128, 128, 8
    $region5: #{elem_exp_loss.1} parent=1 // pred_fallthru
      _
    // Predicated region
    $region6: #{elem_exp_loss.1} parent=1 // pred_check
      _
    $region7: #{elem_exp_loss.1} parent=1 // pred_check_branch
      %23 = sbr.rel (0) target = $region9
    $region8: #{elem_exp_loss.1} parent=1 // pred_region
      %s25 = ssub.s32 2048, 2048
      %26 = vsyncadd [#allocation6], %s25
      %s27 = sshll.u32 [#allocation5], 4
      %s28 = int_to_ptr.vmem [resolvable:$true] %s27
      %33 = dma.hbm_to_vmem [thread:$0]  %s1, 2048, %s28, [#allocation6], 128, 128, 8
    $region9: #{elem_exp_loss.1} parent=1 // pred_fallthru
      _
    // Predicated region
    $region10: #{elem_exp_loss.1} parent=1 // pred_check
      _
    $region11: #{elem_exp_loss.1} parent=1 // pred_check_branch
      %35 = sbr.rel (0) target = $region13
    $region12: #{elem_exp_loss.1} parent=1 // pred_region
      %36 = dma.done [#allocation3], 2048
    $region13: #{elem_exp_loss.1} parent=1 // pred_fallthru
      _
    // Predicated region
    $region14: #{elem_exp_loss.1} parent=1 // pred_check
      _
    $region15: #{elem_exp_loss.1} parent=1 // pred_check_branch
      %38 = sbr.rel (0) target = $region17
    $region16: #{elem_exp_loss.1} parent=1 // pred_region
      %39 = dma.done [#allocation6], 2048
    $region17: #{elem_exp_loss.1} parent=1 // pred_fallthru
      _
    %v40 = vld [vmem:[#allocation2] sm:$0xff]
    %v41 = vld [vmem:[#allocation2 + $0x8] sm:$0xff]
    %v42 = vld [vmem:[#allocation2 + $0x10] sm:$0xff]
    %v43 = vld [vmem:[#allocation2 + $0x18] sm:$0xff]
    %v44 = vld [vmem:[#allocation2 + $0x20] sm:$0xff]
    %v45 = vld [vmem:[#allocation2 + $0x28] sm:$0xff]
    %v46 = vld [vmem:[#allocation2 + $0x30] sm:$0xff]
    %v47 = vld [vmem:[#allocation2 + $0x38] sm:$0xff]
    %v48 = vld [vmem:[#allocation2 + $0x40] sm:$0xff]
    %v49 = vld [vmem:[#allocation2 + $0x48] sm:$0xff]
    %v50 = vld [vmem:[#allocation2 + $0x50] sm:$0xff]
    %v51 = vld [vmem:[#allocation2 + $0x58] sm:$0xff]
    %v52 = vld [vmem:[#allocation2 + $0x60] sm:$0xff]
    %v53 = vld [vmem:[#allocation2 + $0x68] sm:$0xff]
    %v54 = vld [vmem:[#allocation2 + $0x70] sm:$0xff]
    %v55 = vld [vmem:[#allocation2 + $0x78] sm:$0xff]
    %v56 = vld [vmem:[#allocation5] sm:$0xff]
    %v57 = vld [vmem:[#allocation5 + $0x8] sm:$0xff]
    %v58 = vld [vmem:[#allocation5 + $0x10] sm:$0xff]
    %v59 = vld [vmem:[#allocation5 + $0x18] sm:$0xff]
    %v60 = vld [vmem:[#allocation5 + $0x20] sm:$0xff]
    %v61 = vld [vmem:[#allocation5 + $0x28] sm:$0xff]
    %v62 = vld [vmem:[#allocation5 + $0x30] sm:$0xff]
    %v63 = vld [vmem:[#allocation5 + $0x38] sm:$0xff]
    %v64 = vld [vmem:[#allocation5 + $0x40] sm:$0xff]
    %v65 = vld [vmem:[#allocation5 + $0x48] sm:$0xff]
    %v66 = vld [vmem:[#allocation5 + $0x50] sm:$0xff]
    %v67 = vld [vmem:[#allocation5 + $0x58] sm:$0xff]
    %v68 = vld [vmem:[#allocation5 + $0x60] sm:$0xff]
    %v69 = vld [vmem:[#allocation5 + $0x68] sm:$0xff]
    %v70 = vld [vmem:[#allocation5 + $0x70] sm:$0xff]
    %v71 = vld [vmem:[#allocation5 + $0x78] sm:$0xff]
    %v72 = vadd.f32 %v40, 0.25
    %v73 = vadd.f32 %v41, 0.25
    %v74 = vadd.f32 %v42, 0.25
    %v75 = vadd.f32 %v43, 0.25
    %v76 = vadd.f32 %v44, 0.25
    %v77 = vadd.f32 %v45, 0.25
    %v78 = vadd.f32 %v46, 0.25
    %v79 = vadd.f32 %v47, 0.25
    %v80 = vadd.f32 %v48, 0.25
    %v81 = vadd.f32 %v49, 0.25
    %v82 = vadd.f32 %v50, 0.25
    %v83 = vadd.f32 %v51, 0.25
    %v84 = vadd.f32 %v52, 0.25
    %v85 = vadd.f32 %v53, 0.25
    %v86 = vadd.f32 %v54, 0.25
    %v87 = vadd.f32 %v55, 0.25
    %v88 = vlog2.pop %v72
    %v89 = vmul.f32 %v88, 0.6931472
    %v90 = vlog2.pop %v73
    %v91 = vmul.f32 %v90, 0.6931472
    %v92 = vlog2.pop %v74
    %v93 = vmul.f32 %v92, 0.6931472
    %v94 = vlog2.pop %v75
    %v95 = vmul.f32 %v94, 0.6931472
    %v96 = vlog2.pop %v76
    %v97 = vmul.f32 %v96, 0.6931472
    %v98 = vlog2.pop %v77
    %v99 = vmul.f32 %v98, 0.6931472
    %v100 = vlog2.pop %v78
    %v101 = vmul.f32 %v100, 0.6931472
    %v102 = vlog2.pop %v79
    %v103 = vmul.f32 %v102, 0.6931472
    %v104 = vlog2.pop %v80
    %v105 = vmul.f32 %v104, 0.6931472
    %v106 = vlog2.pop %v81
    %v107 = vmul.f32 %v106, 0.6931472
    %v108 = vlog2.pop %v82
    %v109 = vmul.f32 %v108, 0.6931472
    %v110 = vlog2.pop %v83
    %v111 = vmul.f32 %v110, 0.6931472
    %v112 = vlog2.pop %v84
    %v113 = vmul.f32 %v112, 0.6931472
    %v114 = vlog2.pop %v85
    %v115 = vmul.f32 %v114, 0.6931472
    %v116 = vlog2.pop %v86
    %v117 = vmul.f32 %v116, 0.6931472
    %v118 = vlog2.pop %v87
    %v119 = vmul.f32 %v118, 0.6931472
    %v120 = vadd.f32 %v56, 0.25
    %v121 = vadd.f32 %v57, 0.25
    %v122 = vadd.f32 %v58, 0.25
    %v123 = vadd.f32 %v59, 0.25
    %v124 = vadd.f32 %v60, 0.25
    %v125 = vadd.f32 %v61, 0.25
    %v126 = vadd.f32 %v62, 0.25
    %v127 = vadd.f32 %v63, 0.25
    %v128 = vadd.f32 %v64, 0.25
    %v129 = vadd.f32 %v65, 0.25
    %v130 = vadd.f32 %v66, 0.25
    %v131 = vadd.f32 %v67, 0.25
    %v132 = vadd.f32 %v68, 0.25
    %v133 = vadd.f32 %v69, 0.25
    %v134 = vadd.f32 %v70, 0.25
    %v135 = vadd.f32 %v71, 0.25
    %v136 = vlog2.pop %v120
    %v137 = vmul.f32 %v136, 0.6931472
    %v138 = vlog2.pop %v121
    %v139 = vmul.f32 %v138, 0.6931472
    %v140 = vlog2.pop %v122
    %v141 = vmul.f32 %v140, 0.6931472
    %v142 = vlog2.pop %v123
    %v143 = vmul.f32 %v142, 0.6931472
    %v144 = vlog2.pop %v124
    %v145 = vmul.f32 %v144, 0.6931472
    %v146 = vlog2.pop %v125
    %v147 = vmul.f32 %v146, 0.6931472
    %v148 = vlog2.pop %v126
    %v149 = vmul.f32 %v148, 0.6931472
    %v150 = vlog2.pop %v127
    %v151 = vmul.f32 %v150, 0.6931472
    %v152 = vlog2.pop %v128
    %v153 = vmul.f32 %v152, 0.6931472
    %v154 = vlog2.pop %v129
    %v155 = vmul.f32 %v154, 0.6931472
    %v156 = vlog2.pop %v130
    %v157 = vmul.f32 %v156, 0.6931472
    %v158 = vlog2.pop %v131
    %v159 = vmul.f32 %v158, 0.6931472
    %v160 = vlog2.pop %v132
    %v161 = vmul.f32 %v160, 0.6931472
    %v162 = vlog2.pop %v133
    %v163 = vmul.f32 %v162, 0.6931472
    %v164 = vlog2.pop %v134
    %v165 = vmul.f32 %v164, 0.6931472
    %v166 = vlog2.pop %v135
    %v167 = vmul.f32 %v166, 0.6931472
    %v168 = vsub.f32 %v89, %v137
    %v169 = vsub.f32 %v91, %v139
    %v170 = vsub.f32 %v93, %v141
    %v171 = vsub.f32 %v95, %v143
    %v172 = vsub.f32 %v97, %v145
    %v173 = vsub.f32 %v99, %v147
    %v174 = vsub.f32 %v101, %v149
    %v175 = vsub.f32 %v103, %v151
    %v176 = vsub.f32 %v105, %v153
    %v177 = vsub.f32 %v107, %v155
    %v178 = vsub.f32 %v109, %v157
    %v179 = vsub.f32 %v111, %v159
    %v180 = vsub.f32 %v113, %v161
    %v181 = vsub.f32 %v115, %v163
    %v182 = vsub.f32 %v117, %v165
    %v183 = vsub.f32 %v119, %v167
    %v184 = vmul.f32 %v168, 1.442695
    %v185 = vmul.f32 %v169, 1.442695
    %v186 = vmul.f32 %v170, 1.442695
    %v187 = vmul.f32 %v171, 1.442695
    %v188 = vmul.f32 %v172, 1.442695
    %v189 = vmul.f32 %v173, 1.442695
    %v190 = vmul.f32 %v174, 1.442695
    %v191 = vmul.f32 %v175, 1.442695
    %v192 = vmul.f32 %v176, 1.442695
    %v193 = vmul.f32 %v177, 1.442695
    %v194 = vmul.f32 %v178, 1.442695
    %v195 = vmul.f32 %v179, 1.442695
    %v196 = vmul.f32 %v180, 1.442695
    %v197 = vmul.f32 %v181, 1.442695
    %v198 = vmul.f32 %v182, 1.442695
    %v199 = vmul.f32 %v183, 1.442695
    %v200 = vand.u32 2147483647, %v184
    %v201 = vand.u32 2147483647, %v185
    %v202 = vand.u32 2147483647, %v186
    %v203 = vand.u32 2147483647, %v187
    %v204 = vand.u32 2147483647, %v188
    %v205 = vand.u32 2147483647, %v189
    %v206 = vand.u32 2147483647, %v190
    %v207 = vand.u32 2147483647, %v191
    %v208 = vand.u32 2147483647, %v192
    %v209 = vand.u32 2147483647, %v193
    %v210 = vand.u32 2147483647, %v194
    %v211 = vand.u32 2147483647, %v195
    %v212 = vand.u32 2147483647, %v196
    %v213 = vand.u32 2147483647, %v197
    %v214 = vand.u32 2147483647, %v198
    %v215 = vand.u32 2147483647, %v199
    %216 = vst [vmem:[#allocation7] sm:$0xff] %v200
    %217 = vst [vmem:[#allocation7 + $0x8] sm:$0xff] %v201
    %218 = vst [vmem:[#allocation7 + $0x10] sm:$0xff] %v202
    %219 = vst [vmem:[#allocation7 + $0x18] sm:$0xff] %v203
    %220 = vst [vmem:[#allocation7 + $0x20] sm:$0xff] %v204
    %221 = vst [vmem:[#allocation7 + $0x28] sm:$0xff] %v205
    %222 = vst [vmem:[#allocation7 + $0x30] sm:$0xff] %v206
    %223 = vst [vmem:[#allocation7 + $0x38] sm:$0xff] %v207
    %224 = vst [vmem:[#allocation7 + $0x40] sm:$0xff] %v208
    %225 = vst [vmem:[#allocation7 + $0x48] sm:$0xff] %v209
    %226 = vst [vmem:[#allocation7 + $0x50] sm:$0xff] %v210
    %227 = vst [vmem:[#allocation7 + $0x58] sm:$0xff] %v211
    %228 = vst [vmem:[#allocation7 + $0x60] sm:$0xff] %v212
    %229 = vst [vmem:[#allocation7 + $0x68] sm:$0xff] %v213
    %230 = vst [vmem:[#allocation7 + $0x70] sm:$0xff] %v214
    %231 = vst [vmem:[#allocation7 + $0x78] sm:$0xff] %v215
    // Predicated region
    $region18: #{elem_exp_loss.1} parent=1 // pred_check
      _
    $region19: #{elem_exp_loss.1} parent=1 // pred_check_branch
      %233 = sbr.rel (0) target = $region21
    $region20: #{elem_exp_loss.1} parent=1 // pred_region
      %s235 = ssub.s32 2048, 2048
      %236 = vsyncadd [#allocation4], %s235
      %s237 = sshll.u32 [#allocation7], 4
      %s238 = int_to_ptr.vmem [resolvable:$true] %s237
      %243 = dma.vmem_to_hbm [thread:$0]  %s238, 2048, %s2, [#allocation4], 128, 128, 8
    $region21: #{elem_exp_loss.1} parent=1 // pred_fallthru
      _
    // Predicated region
    $region22: #{elem_exp_loss.1} parent=1 // pred_check
      _
    $region23: #{elem_exp_loss.1} parent=1 // pred_check_branch
      %245 = sbr.rel (0) target = $region25
    $region24: #{elem_exp_loss.1} parent=1 // pred_region
      %246 = dma.done [#allocation4], 2048
    $region25: #{elem_exp_loss.1} parent=1 // pred_fallthru
      _
    %247 = vsyncpa [#allocation3], 1
    %248 = vsyncpa [#allocation6], 1
    %249 = vsyncpa [#allocation4], 1

</llo_original>
